<compile_context>
chip_gen: v5e
topology: v5e:2x2
jax: 0.10.0
libtpu: 0.0.40
codegen_flags: <defaults>
</compile_context>

<pallas_src>
import functools

import jax
import jax.numpy as jnp
from jax import lax
from jax.experimental import pallas as pl
from jax.experimental.pallas import tpu as pltpu


def _downsample_kernel(x_ref, sel_ref, w_ref, shift_ref, o_ref, pf_ref, *,
                       stride, K, dil, pad, Hp, Wp, C_in, C_out):
    """One batch element per grid step (NCHW native).

    x_ref:     (1, Cin*Hp, stride*stride*Wp)  free reshape of the NCHW input
    sel_ref:   (Wlen, Wrow)   0/1 column-decimation + L/R zero-pad matrix
    w_ref:     (Cout, K*K*Cin) BN-scale-folded weights in (kh, kw, ci) order
    shift_ref: (Cout, 1)       beta - mean * gamma / sqrt(var + eps)
    o_ref:     (1, Cout, Hp, Wp) NCHW output block
    pf_ref:    (Cin, Ltot)     flattened zero-padded pooled map, row pitch Wrow
    """
    Wi = Wp * stride                       # input row width (after crop)
    Wlen = (Wp - 1) * stride + 1
    Wrow = Wp + 2 * pad
    M = Hp * Wrow
    Ltot = (Hp + 2 * pad) * Wrow + 2 * pad

    xb = x_ref[0]                                             # (Cin*Hp, stride*Wi)

    # ---- MaxPool2d(stride, stride): row taps are contiguous lane chunks ----
    m = xb[:, 0:Wi]
    for s in range(1, stride):
        m = jnp.maximum(m, xb[:, s * Wi:(s + 1) * Wi])        # (Cin*Hp, Wi)
    t = m[:, 0:Wlen]
    for dj in range(1, stride):
        t = jnp.maximum(t, m[:, dj:dj + Wlen])                # (Cin*Hp, Wlen)

    # Column decimation + left/right zero padding in one tiny selection matmul
    prow = jnp.dot(t, sel_ref[...], preferred_element_type=jnp.float32)
    prow = prow.astype(pf_ref.dtype).reshape(C_in, Hp, Wrow)  # (Cin, Hp, Wrow)

    # ---- scatter pooled rows into the flat zero-padded map (pitch Wrow) ----
    if pad > 0:
        pf_ref[:, 0:pad * Wrow] = jnp.zeros((C_in, pad * Wrow), pf_ref.dtype)
        pf_ref[:, (pad + Hp) * Wrow:Ltot] = jnp.zeros(
            (C_in, Ltot - (pad + Hp) * Wrow), pf_ref.dtype)
    for hp in range(Hp):
        pf_ref[:, (hp + pad) * Wrow:(hp + pad + 1) * Wrow] = prow[:, hp, :]

    # ---- conv: each tap is a contiguous lane window; ONE fused MXU dot ----
    parts = []
    for kh in range(K):
        for kw in range(K):
            off = dil * (kh * Wrow + kw)
            parts.append(pf_ref[:, off:off + M])              # (Cin, M)
    rhs = parts[0] if len(parts) == 1 else jnp.concatenate(parts, axis=0)
    y = jnp.dot(w_ref[...], rhs, preferred_element_type=jnp.float32)  # (Cout, M)

    # ---- folded-BN shift + ReLU; per-row NCHW stores drop the pad columns ----
    y = jnp.maximum(y + shift_ref[...], 0.0).astype(o_ref.dtype)
    for hp in range(Hp):
        o_ref[0, :, hp, :] = y[:, hp * Wrow:hp * Wrow + Wp]


def _vmem_limit_bytes():
    # Derive the scoped-VMEM budget from the chip, leaving ~20% headroom.
    try:
        cap = getattr(pltpu.get_tpu_info(), "vmem_capacity_bytes", None)
        if cap:
            return int(cap * 0.8)
    except Exception:
        pass
    return 48 * 1024 * 1024


def conv_pool_downsample(x_nchw, weight_oihw, gamma, beta, running_mean,
                         running_var, *, stride=2, dilation=1, eps=1e-5):
    N, C_in, H, W = x_nchw.shape
    C_out, C_in_w, K, K2 = weight_oihw.shape
    assert C_in_w == C_in and K2 == K
    if ((K - 1) * dilation) % 2 != 0:
        # pad = dilation*(K-1)//2 floors; 'same'-size conv only holds when the
        # effective kernel extent is odd.  Avoid silent OOB scratch reads.
        raise ValueError("kernel_size/dilation with odd (K-1)*dilation is not supported")
    pad = dilation * (K - 1) // 2
    Hp, Wp = H // stride, W // stride       # MaxPool2d floors (ceil_mode=False)
    assert Hp > 0 and Wp > 0

    Wlen = (Wp - 1) * stride + 1
    Wrow = Wp + 2 * pad
    Ltot = (Hp + 2 * pad) * Wrow + 2 * pad

    # ---- wrapper glue: only free reshapes + tiny weight-side math ----
    x = x_nchw[:, :, :Hp * stride, :Wp * stride]              # no-op when divisible
    x = x.reshape(N, C_in * Hp, stride * stride * Wp)         # free (row-major)

    rows = jnp.arange(Wp) * stride
    cols = jnp.arange(Wp) + pad
    sel = jnp.zeros((Wlen, Wrow), x.dtype).at[rows, cols].set(
        jnp.ones((Wp,), x.dtype))                             # tiny constant

    inv = (gamma / jnp.sqrt(running_var + eps)).astype(jnp.float32)
    w_fold = weight_oihw.astype(jnp.float32) * inv[:, None, None, None]
    w_slab = jnp.transpose(w_fold, (0, 2, 3, 1)).reshape(
        C_out, K * K * C_in).astype(x.dtype)                  # (kh, kw, ci) order
    shift = (beta - running_mean * inv).reshape(C_out, 1).astype(jnp.float32)

    kernel = functools.partial(
        _downsample_kernel, stride=stride, K=K, dil=dilation, pad=pad,
        Hp=Hp, Wp=Wp, C_in=C_in, C_out=C_out)

    itemsize = jnp.dtype(x.dtype).itemsize
    flops = (2 * N * Hp * Wrow * K * K * C_in * C_out
             + 2 * N * C_in * Hp * Wlen * Wrow)
    bytes_accessed = (x.size * itemsize + w_slab.size * itemsize
                      + sel.size * itemsize + shift.size * 4
                      + N * C_out * Hp * Wp * itemsize)

    out = pl.pallas_call(
        kernel,
        out_shape=jax.ShapeDtypeStruct((N, C_out, Hp, Wp), x.dtype),
        grid_spec=pltpu.PrefetchScalarGridSpec(
            num_scalar_prefetch=0,
            grid=(N,),
            in_specs=[
                pl.BlockSpec((1, C_in * Hp, stride * stride * Wp),
                             lambda n: (n, 0, 0)),
                pl.BlockSpec((Wlen, Wrow), lambda n: (0, 0)),
                pl.BlockSpec((C_out, K * K * C_in), lambda n: (0, 0)),
                pl.BlockSpec((C_out, 1), lambda n: (0, 0)),
            ],
            out_specs=pl.BlockSpec((1, C_out, Hp, Wp), lambda n: (n, 0, 0, 0)),
            scratch_shapes=[pltpu.VMEM((C_in, Ltot), x.dtype)],
        ),
        compiler_params=pltpu.CompilerParams(
            dimension_semantics=("parallel",),
            vmem_limit_bytes=_vmem_limit_bytes()),
        cost_estimate=pl.CostEstimate(flops=int(flops), transcendentals=0,
                                      bytes_accessed=int(bytes_accessed)),
    )(x, sel, w_slab, shift)
    return out                                               # already NCHW


def _reference(x, weight, gamma, beta, running_mean, running_var,
               *, stride, dilation, eps):
    K = weight.shape[-1]
    pad = dilation * (K - 1) // 2
    pooled = lax.reduce_window(x, -jnp.inf, lax.max,
                               (1, 1, stride, stride), (1, 1, stride, stride),
                               "VALID")
    padded = jnp.pad(pooled, ((0, 0), (0, 0), (pad, pad), (pad, pad)))
    conv = lax.conv_general_dilated(
        padded, weight, window_strides=(1, 1), padding="VALID",
        rhs_dilation=(dilation, dilation),
        dimension_numbers=("NCHW", "OIHW", "NCHW"),
        precision=lax.Precision.HIGHEST)
    inv = gamma / jnp.sqrt(running_var + eps)
    bn = conv * inv[None, :, None, None] + \
        (beta - running_mean * inv)[None, :, None, None]
    return jnp.maximum(bn, 0.0)


if __name__ == "__main__":
    N, C_in, H, W = 2, 4, 16, 16
    C_out, K, stride, dilation = 8, 3, 2, 1
    eps = 1e-5

    key = jax.random.PRNGKey(0)
    k1, k2, k3, k4, k5, k6 = jax.random.split(key, 6)
    x = jax.random.normal(k1, (N, C_in, H, W), jnp.float32)
    weight = 0.2 * jax.random.normal(k2, (C_out, C_in, K, K), jnp.float32)
    gamma = 1.0 + 0.1 * jax.random.normal(k3, (C_out,), jnp.float32)
    beta = 0.1 * jax.random.normal(k4, (C_out,), jnp.float32)
    running_mean = 0.1 * jax.random.normal(k5, (C_out,), jnp.float32)
    running_var = jnp.abs(jax.random.normal(k6, (C_out,), jnp.float32)) + 0.5

    out = conv_pool_downsample(x, weight, gamma, beta, running_mean, running_var,
                               stride=stride, dilation=dilation, eps=eps)
    out = jax.block_until_ready(out)

    assert out.shape == (N, C_out, H // stride, W // stride), out.shape

    ref = _reference(x, weight, gamma, beta, running_mean, running_var,
                     stride=stride, dilation=dilation, eps=eps)
    err = float(jnp.max(jnp.abs(out - ref)))
    assert err < 1e-2, f"max abs err too large: {err}"

    print("KERNEL_OK")
</pallas_src>

<mosaic_0001>
module attributes {stable_mosaic.version = 11 : i64} {
  func.func @_downsample_kernel(%arg0: i32, %arg1: memref<1x32x32xf32, #tpu.memory_space<vmem>>, %arg2: memref<15x10xf32, #tpu.memory_space<vmem>>, %arg3: memref<8x36xf32, #tpu.memory_space<vmem>>, %arg4: memref<8x1xf32, #tpu.memory_space<vmem>>, %arg5: memref<1x8x8x8xf32, #tpu.memory_space<vmem>>, %arg6: memref<4x102xf32, #tpu.memory_space<vmem>>) attributes {dimension_semantics = [#tpu.dimension_semantics<parallel>], iteration_bounds = array<i64: 2>, scalar_prefetch = 0 : i64, scratch_operands = 1 : i64, tpu.core_type = #tpu.core_type<tc>, window_params = [{transform_indices = @transform_0, window_bounds = array<i64: 1, 32, 32>}, {pipeline_mode = #tpu.pipeline_mode<synchronous>, transform_indices = @transform_1, window_bounds = array<i64: 15, 10>}, {pipeline_mode = #tpu.pipeline_mode<synchronous>, transform_indices = @transform_2, window_bounds = array<i64: 8, 36>}, {pipeline_mode = #tpu.pipeline_mode<synchronous>, transform_indices = @transform_3, window_bounds = array<i64: 8, 1>}, {transform_indices = @transform_4, window_bounds = array<i64: 1, 8, 8, 8>}]} {
    %c0 = arith.constant 0 : index
    %c0_0 = arith.constant 0 : index
    %c0_1 = arith.constant 0 : index
    %0 = vector.load %arg1[%c0, %c0_0, %c0_1] : memref<1x32x32xf32, #tpu.memory_space<vmem>>, vector<1x32x32xf32>
    %1 = vector.shape_cast %0 : vector<1x32x32xf32> to vector<32x32xf32>
    %2 = vector.extract_strided_slice %1 {offsets = [0, 0], sizes = [32, 16], strides = [1, 1]} : vector<32x32xf32> to vector<32x16xf32>
    %3 = vector.extract_strided_slice %1 {offsets = [0, 16], sizes = [32, 16], strides = [1, 1]} : vector<32x32xf32> to vector<32x16xf32>
    %4 = arith.maximumf %2, %3 : vector<32x16xf32>
    %5 = vector.extract_strided_slice %4 {offsets = [0, 0], sizes = [32, 15], strides = [1, 1]} : vector<32x16xf32> to vector<32x15xf32>
    %6 = vector.extract_strided_slice %4 {offsets = [0, 1], sizes = [32, 15], strides = [1, 1]} : vector<32x16xf32> to vector<32x15xf32>
    %7 = arith.maximumf %5, %6 : vector<32x15xf32>
    %c0_2 = arith.constant 0 : index
    %c0_3 = arith.constant 0 : index
    %8 = vector.load %arg2[%c0_2, %c0_3] : memref<15x10xf32, #tpu.memory_space<vmem>>, vector<15x10xf32>
    %cst = arith.constant dense<0.000000e+00> : vector<32x10xf32>
    %9 = tpu.matmul %7, %8, %cst {dimension_numbers = #tpu.dot_dimension_numbers<[1], [0], [0], [1], [0, 0, 1, 1], [], []>} : vector<32x15xf32>, vector<15x10xf32>, vector<32x10xf32> -> vector<32x10xf32>
    %10 = vector.shape_cast %9 : vector<32x10xf32> to vector<4x8x10xf32>
    %cst_4 = arith.constant 0.000000e+00 : f32
    %11 = vector.broadcast %cst_4 : f32 to vector<4x10xf32>
    %c0_5 = arith.constant 0 : index
    %c0_6 = arith.constant 0 : index
    %12 = vector.load %arg6[%c0_5, %c0_6] : memref<4x102xf32, #tpu.memory_space<vmem>>, vector<4x10xf32>
    tpu.vector_store %arg6[%c0_5, %c0_6], %11 {strides = array<i32>} : memref<4x102xf32, #tpu.memory_space<vmem>>, vector<4x10xf32>,
    %cst_7 = arith.constant 0.000000e+00 : f32
    %13 = vector.broadcast %cst_7 : f32 to vector<4x12xf32>
    %c0_8 = arith.constant 0 : index
    %c90 = arith.constant 90 : index
    %14 = vector.load %arg6[%c0_8, %c90] : memref<4x102xf32, #tpu.memory_space<vmem>>, vector<4x12xf32>
    tpu.vector_store %arg6[%c0_8, %c90], %13 {strides = array<i32>} : memref<4x102xf32, #tpu.memory_space<vmem>>, vector<4x12xf32>,
    %15 = vector.extract_strided_slice %10 {offsets = [0, 0, 0], sizes = [4, 1, 10], strides = [1, 1, 1]} : vector<4x8x10xf32> to vector<4x1x10xf32>
    %16 = vector.shape_cast %15 : vector<4x1x10xf32> to vector<4x10xf32>
    %c0_9 = arith.constant 0 : index
    %c10 = arith.constant 10 : index
    %17 = vector.load %arg6[%c0_9, %c10] : memref<4x102xf32, #tpu.memory_space<vmem>>, vector<4x10xf32>
    tpu.vector_store %arg6[%c0_9, %c10], %16 {strides = array<i32>} : memref<4x102xf32, #tpu.memory_space<vmem>>, vector<4x10xf32>,
    %18 = vector.extract_strided_slice %10 {offsets = [0, 1, 0], sizes = [4, 1, 10], strides = [1, 1, 1]} : vector<4x8x10xf32> to vector<4x1x10xf32>
    %19 = vector.shape_cast %18 : vector<4x1x10xf32> to vector<4x10xf32>
    %c0_10 = arith.constant 0 : index
    %c20 = arith.constant 20 : index
    %20 = vector.load %arg6[%c0_10, %c20] : memref<4x102xf32, #tpu.memory_space<vmem>>, vector<4x10xf32>
    tpu.vector_store %arg6[%c0_10, %c20], %19 {strides = array<i32>} : memref<4x102xf32, #tpu.memory_space<vmem>>, vector<4x10xf32>,
    %21 = vector.extract_strided_slice %10 {offsets = [0, 2, 0], sizes = [4, 1, 10], strides = [1, 1, 1]} : vector<4x8x10xf32> to vector<4x1x10xf32>
    %22 = vector.shape_cast %21 : vector<4x1x10xf32> to vector<4x10xf32>
    %c0_11 = arith.constant 0 : index
    %c30 = arith.constant 30 : index
    %23 = vector.load %arg6[%c0_11, %c30] : memref<4x102xf32, #tpu.memory_space<vmem>>, vector<4x10xf32>
    tpu.vector_store %arg6[%c0_11, %c30], %22 {strides = array<i32>} : memref<4x102xf32, #tpu.memory_space<vmem>>, vector<4x10xf32>,
    %24 = vector.extract_strided_slice %10 {offsets = [0, 3, 0], sizes = [4, 1, 10], strides = [1, 1, 1]} : vector<4x8x10xf32> to vector<4x1x10xf32>
    %25 = vector.shape_cast %24 : vector<4x1x10xf32> to vector<4x10xf32>
    %c0_12 = arith.constant 0 : index
    %c40 = arith.constant 40 : index
    %26 = vector.load %arg6[%c0_12, %c40] : memref<4x102xf32, #tpu.memory_space<vmem>>, vector<4x10xf32>
    tpu.vector_store %arg6[%c0_12, %c40], %25 {strides = array<i32>} : memref<4x102xf32, #tpu.memory_space<vmem>>, vector<4x10xf32>,
    %27 = vector.extract_strided_slice %10 {offsets = [0, 4, 0], sizes = [4, 1, 10], strides = [1, 1, 1]} : vector<4x8x10xf32> to vector<4x1x10xf32>
    %28 = vector.shape_cast %27 : vector<4x1x10xf32> to vector<4x10xf32>
    %c0_13 = arith.constant 0 : index
    %c50 = arith.constant 50 : index
    %29 = vector.load %arg6[%c0_13, %c50] : memref<4x102xf32, #tpu.memory_space<vmem>>, vector<4x10xf32>
    tpu.vector_store %arg6[%c0_13, %c50], %28 {strides = array<i32>} : memref<4x102xf32, #tpu.memory_space<vmem>>, vector<4x10xf32>,
    %30 = vector.extract_strided_slice %10 {offsets = [0, 5, 0], sizes = [4, 1, 10], strides = [1, 1, 1]} : vector<4x8x10xf32> to vector<4x1x10xf32>
    %31 = vector.shape_cast %30 : vector<4x1x10xf32> to vector<4x10xf32>
    %c0_14 = arith.constant 0 : index
    %c60 = arith.constant 60 : index
    %32 = vector.load %arg6[%c0_14, %c60] : memref<4x102xf32, #tpu.memory_space<vmem>>, vector<4x10xf32>
    tpu.vector_store %arg6[%c0_14, %c60], %31 {strides = array<i32>} : memref<4x102xf32, #tpu.memory_space<vmem>>, vector<4x10xf32>,
    %33 = vector.extract_strided_slice %10 {offsets = [0, 6, 0], sizes = [4, 1, 10], strides = [1, 1, 1]} : vector<4x8x10xf32> to vector<4x1x10xf32>
    %34 = vector.shape_cast %33 : vector<4x1x10xf32> to vector<4x10xf32>
    %c0_15 = arith.constant 0 : index
    %c70 = arith.constant 70 : index
    %35 = vector.load %arg6[%c0_15, %c70] : memref<4x102xf32, #tpu.memory_space<vmem>>, vector<4x10xf32>
    tpu.vector_store %arg6[%c0_15, %c70], %34 {strides = array<i32>} : memref<4x102xf32, #tpu.memory_space<vmem>>, vector<4x10xf32>,
    %36 = vector.extract_strided_slice %10 {offsets = [0, 7, 0], sizes = [4, 1, 10], strides = [1, 1, 1]} : vector<4x8x10xf32> to vector<4x1x10xf32>
    %37 = vector.shape_cast %36 : vector<4x1x10xf32> to vector<4x10xf32>
    %c0_16 = arith.constant 0 : index
    %c80 = arith.constant 80 : index
    %38 = vector.load %arg6[%c0_16, %c80] : memref<4x102xf32, #tpu.memory_space<vmem>>, vector<4x10xf32>
    tpu.vector_store %arg6[%c0_16, %c80], %37 {strides = array<i32>} : memref<4x102xf32, #tpu.memory_space<vmem>>, vector<4x10xf32>,
    %c0_17 = arith.constant 0 : index
    %c0_18 = arith.constant 0 : index
    %39 = vector.load %arg6[%c0_17, %c0_18] : memref<4x102xf32, #tpu.memory_space<vmem>>, vector<4x80xf32>
    %c0_19 = arith.constant 0 : index
    %c1 = arith.constant 1 : index
    %40 = vector.load %arg6[%c0_19, %c1] : memref<4x102xf32, #tpu.memory_space<vmem>>, vector<4x80xf32>
    %c0_20 = arith.constant 0 : index
    %c2 = arith.constant 2 : index
    %41 = vector.load %arg6[%c0_20, %c2] : memref<4x102xf32, #tpu.memory_space<vmem>>, vector<4x80xf32>
    %c0_21 = arith.constant 0 : index
    %c10_22 = arith.constant 10 : index
    %42 = vector.load %arg6[%c0_21, %c10_22] : memref<4x102xf32, #tpu.memory_space<vmem>>, vector<4x80xf32>
    %c0_23 = arith.constant 0 : index
    %c11 = arith.constant 11 : index
    %43 = vector.load %arg6[%c0_23, %c11] : memref<4x102xf32, #tpu.memory_space<vmem>>, vector<4x80xf32>
    %c0_24 = arith.constant 0 : index
    %c12 = arith.constant 12 : index
    %44 = vector.load %arg6[%c0_24, %c12] : memref<4x102xf32, #tpu.memory_space<vmem>>, vector<4x80xf32>
    %c0_25 = arith.constant 0 : index
    %c20_26 = arith.constant 20 : index
    %45 = vector.load %arg6[%c0_25, %c20_26] : memref<4x102xf32, #tpu.memory_space<vmem>>, vector<4x80xf32>
    %c0_27 = arith.constant 0 : index
    %c21 = arith.constant 21 : index
    %46 = vector.load %arg6[%c0_27, %c21] : memref<4x102xf32, #tpu.memory_space<vmem>>, vector<4x80xf32>
    %c0_28 = arith.constant 0 : index
    %c22 = arith.constant 22 : index
    %47 = vector.load %arg6[%c0_28, %c22] : memref<4x102xf32, #tpu.memory_space<vmem>>, vector<4x80xf32>
    %48 = tpu.concatenate %39, %40, %41, %42, %43, %44, %45, %46, %47 in 0 : vector<4x80xf32>, vector<4x80xf32>, vector<4x80xf32>, vector<4x80xf32>, vector<4x80xf32>, vector<4x80xf32>, vector<4x80xf32>, vector<4x80xf32>, vector<4x80xf32> -> vector<36x80xf32>
    %c0_29 = arith.constant 0 : index
    %c0_30 = arith.constant 0 : index
    %49 = vector.load %arg3[%c0_29, %c0_30] : memref<8x36xf32, #tpu.memory_space<vmem>>, vector<8x36xf32>
    %cst_31 = arith.constant dense<0.000000e+00> : vector<8x80xf32>
    %50 = tpu.matmul %49, %48, %cst_31 {dimension_numbers = #tpu.dot_dimension_numbers<[1], [0], [0], [1], [0, 0, 1, 1], [], []>} : vector<8x36xf32>, vector<36x80xf32>, vector<8x80xf32> -> vector<8x80xf32>
    %c0_32 = arith.constant 0 : index
    %c0_33 = arith.constant 0 : index
    %51 = vector.load %arg4[%c0_32, %c0_33] : memref<8x1xf32, #tpu.memory_space<vmem>>, vector<8x1xf32>
    %52 = vector.broadcast %51 : vector<8x1xf32> to vector<8x80xf32>
    %53 = arith.addf %50, %52 : vector<8x80xf32>
    %cst_34 = arith.constant 0.000000e+00 : f32
    %54 = vector.broadcast %cst_34 : f32 to vector<8x80xf32>
    %55 = arith.maximumf %53, %54 : vector<8x80xf32>
    %56 = vector.extract_strided_slice %55 {offsets = [0, 0], sizes = [8, 8], strides = [1, 1]} : vector<8x80xf32> to vector<8x8xf32>
    %c0_35 = arith.constant 0 : index
    %c0_36 = arith.constant 0 : index
    %c0_37 = arith.constant 0 : index
    %c0_38 = arith.constant 0 : index
    %57 = vector.load %arg5[%c0_35, %c0_36, %c0_37, %c0_38] : memref<1x8x8x8xf32, #tpu.memory_space<vmem>>, vector<1x8x1x8xf32>
    %58 = vector.shape_cast %57 : vector<1x8x1x8xf32> to vector<8x8xf32>
    %59 = vector.shape_cast %56 : vector<8x8xf32> to vector<1x8x1x8xf32>
    tpu.vector_store %arg5[%c0_35, %c0_36, %c0_37, %c0_38], %59 {strides = array<i32>} : memref<1x8x8x8xf32, #tpu.memory_space<vmem>>, vector<1x8x1x8xf32>,
    %60 = vector.extract_strided_slice %55 {offsets = [0, 10], sizes = [8, 8], strides = [1, 1]} : vector<8x80xf32> to vector<8x8xf32>
    %c0_39 = arith.constant 0 : index
    %c0_40 = arith.constant 0 : index
    %c1_41 = arith.constant 1 : index
    %c0_42 = arith.constant 0 : index
    %61 = vector.load %arg5[%c0_39, %c0_40, %c1_41, %c0_42] : memref<1x8x8x8xf32, #tpu.memory_space<vmem>>, vector<1x8x1x8xf32>
    %62 = vector.shape_cast %61 : vector<1x8x1x8xf32> to vector<8x8xf32>
    %63 = vector.shape_cast %60 : vector<8x8xf32> to vector<1x8x1x8xf32>
    tpu.vector_store %arg5[%c0_39, %c0_40, %c1_41, %c0_42], %63 {strides = array<i32>} : memref<1x8x8x8xf32, #tpu.memory_space<vmem>>, vector<1x8x1x8xf32>,
    %64 = vector.extract_strided_slice %55 {offsets = [0, 20], sizes = [8, 8], strides = [1, 1]} : vector<8x80xf32> to vector<8x8xf32>
    %c0_43 = arith.constant 0 : index
    %c0_44 = arith.constant 0 : index
    %c2_45 = arith.constant 2 : index
    %c0_46 = arith.constant 0 : index
    %65 = vector.load %arg5[%c0_43, %c0_44, %c2_45, %c0_46] : memref<1x8x8x8xf32, #tpu.memory_space<vmem>>, vector<1x8x1x8xf32>
    %66 = vector.shape_cast %65 : vector<1x8x1x8xf32> to vector<8x8xf32>
    %67 = vector.shape_cast %64 : vector<8x8xf32> to vector<1x8x1x8xf32>
    tpu.vector_store %arg5[%c0_43, %c0_44, %c2_45, %c0_46], %67 {strides = array<i32>} : memref<1x8x8x8xf32, #tpu.memory_space<vmem>>, vector<1x8x1x8xf32>,
    %68 = vector.extract_strided_slice %55 {offsets = [0, 30], sizes = [8, 8], strides = [1, 1]} : vector<8x80xf32> to vector<8x8xf32>
    %c0_47 = arith.constant 0 : index
    %c0_48 = arith.constant 0 : index
    %c3 = arith.constant 3 : index
    %c0_49 = arith.constant 0 : index
    %69 = vector.load %arg5[%c0_47, %c0_48, %c3, %c0_49] : memref<1x8x8x8xf32, #tpu.memory_space<vmem>>, vector<1x8x1x8xf32>
    %70 = vector.shape_cast %69 : vector<1x8x1x8xf32> to vector<8x8xf32>
    %71 = vector.shape_cast %68 : vector<8x8xf32> to vector<1x8x1x8xf32>
    tpu.vector_store %arg5[%c0_47, %c0_48, %c3, %c0_49], %71 {strides = array<i32>} : memref<1x8x8x8xf32, #tpu.memory_space<vmem>>, vector<1x8x1x8xf32>,
    %72 = vector.extract_strided_slice %55 {offsets = [0, 40], sizes = [8, 8], strides = [1, 1]} : vector<8x80xf32> to vector<8x8xf32>
    %c0_50 = arith.constant 0 : index
    %c0_51 = arith.constant 0 : index
    %c4 = arith.constant 4 : index
    %c0_52 = arith.constant 0 : index
    %73 = vector.load %arg5[%c0_50, %c0_51, %c4, %c0_52] : memref<1x8x8x8xf32, #tpu.memory_space<vmem>>, vector<1x8x1x8xf32>
    %74 = vector.shape_cast %73 : vector<1x8x1x8xf32> to vector<8x8xf32>
    %75 = vector.shape_cast %72 : vector<8x8xf32> to vector<1x8x1x8xf32>
    tpu.vector_store %arg5[%c0_50, %c0_51, %c4, %c0_52], %75 {strides = array<i32>} : memref<1x8x8x8xf32, #tpu.memory_space<vmem>>, vector<1x8x1x8xf32>,
    %76 = vector.extract_strided_slice %55 {offsets = [0, 50], sizes = [8, 8], strides = [1, 1]} : vector<8x80xf32> to vector<8x8xf32>
    %c0_53 = arith.constant 0 : index
    %c0_54 = arith.constant 0 : index
    %c5 = arith.constant 5 : index
    %c0_55 = arith.constant 0 : index
    %77 = vector.load %arg5[%c0_53, %c0_54, %c5, %c0_55] : memref<1x8x8x8xf32, #tpu.memory_space<vmem>>, vector<1x8x1x8xf32>
    %78 = vector.shape_cast %77 : vector<1x8x1x8xf32> to vector<8x8xf32>
    %79 = vector.shape_cast %76 : vector<8x8xf32> to vector<1x8x1x8xf32>
    tpu.vector_store %arg5[%c0_53, %c0_54, %c5, %c0_55], %79 {strides = array<i32>} : memref<1x8x8x8xf32, #tpu.memory_space<vmem>>, vector<1x8x1x8xf32>,
    %80 = vector.extract_strided_slice %55 {offsets = [0, 60], sizes = [8, 8], strides = [1, 1]} : vector<8x80xf32> to vector<8x8xf32>
    %c0_56 = arith.constant 0 : index
    %c0_57 = arith.constant 0 : index
    %c6 = arith.constant 6 : index
    %c0_58 = arith.constant 0 : index
    %81 = vector.load %arg5[%c0_56, %c0_57, %c6, %c0_58] : memref<1x8x8x8xf32, #tpu.memory_space<vmem>>, vector<1x8x1x8xf32>
    %82 = vector.shape_cast %81 : vector<1x8x1x8xf32> to vector<8x8xf32>
    %83 = vector.shape_cast %80 : vector<8x8xf32> to vector<1x8x1x8xf32>
    tpu.vector_store %arg5[%c0_56, %c0_57, %c6, %c0_58], %83 {strides = array<i32>} : memref<1x8x8x8xf32, #tpu.memory_space<vmem>>, vector<1x8x1x8xf32>,
    %84 = vector.extract_strided_slice %55 {offsets = [0, 70], sizes = [8, 8], strides = [1, 1]} : vector<8x80xf32> to vector<8x8xf32>
    %c0_59 = arith.constant 0 : index
    %c0_60 = arith.constant 0 : index
    %c7 = arith.constant 7 : index
    %c0_61 = arith.constant 0 : index
    %85 = vector.load %arg5[%c0_59, %c0_60, %c7, %c0_61] : memref<1x8x8x8xf32, #tpu.memory_space<vmem>>, vector<1x8x1x8xf32>
    %86 = vector.shape_cast %85 : vector<1x8x1x8xf32> to vector<8x8xf32>
    %87 = vector.shape_cast %84 : vector<8x8xf32> to vector<1x8x1x8xf32>
    tpu.vector_store %arg5[%c0_59, %c0_60, %c7, %c0_61], %87 {strides = array<i32>} : memref<1x8x8x8xf32, #tpu.memory_space<vmem>>, vector<1x8x1x8xf32>,
    return
  }
  func.func @transform_0(%arg0: i32) -> (i32, i32, i32) {
    %c0_i32 = arith.constant 0 : i32
    %c0_i32_0 = arith.constant 0 : i32
    %c0_i32_1 = arith.constant 0 : i32
    return %arg0, %c0_i32, %c0_i32_0 : i32, i32, i32
  }
  func.func @transform_1(%arg0: i32) -> (i32, i32) {
    %c0_i32 = arith.constant 0 : i32
    %c0_i32_0 = arith.constant 0 : i32
    %c0_i32_1 = arith.constant 0 : i32
    return %c0_i32, %c0_i32_0 : i32, i32
  }
  func.func @transform_2(%arg0: i32) -> (i32, i32) {
    %c0_i32 = arith.constant 0 : i32
    %c0_i32_0 = arith.constant 0 : i32
    %c0_i32_1 = arith.constant 0 : i32
    return %c0_i32, %c0_i32_0 : i32, i32
  }
  func.func @transform_3(%arg0: i32) -> (i32, i32) {
    %c0_i32 = arith.constant 0 : i32
    %c0_i32_0 = arith.constant 0 : i32
    %c0_i32_1 = arith.constant 0 : i32
    return %c0_i32, %c0_i32_0 : i32, i32
  }
  func.func @transform_4(%arg0: i32) -> (i32, i32, i32, i32) {
    %c0_i32 = arith.constant 0 : i32
    %c0_i32_0 = arith.constant 0 : i32
    %c0_i32_1 = arith.constant 0 : i32
    %c0_i32_2 = arith.constant 0 : i32
    return %arg0, %c0_i32, %c0_i32_0, %c0_i32_1 : i32, i32, i32, i32
  }
}

</mosaic_0001>

<llo_original>
// kernel: tpu_custom_call.1
$region0: #{tpu_custom_call.1}
  #allocation0 [shape = 'u32[]', space=smem, size = 0x4, offset = 0x4, fixed_abs, tag = 'smem constant byte address 0x4 - core index']
  #allocation1 [shape = 'u32[72,128]{1,0:T(1,128)}', space=vmem, size = 0x9000, scoped, tag = 'internal scratch']
  #allocation2 [shape = 'f32[4,102]{1,0:T(4,128)}', space=vmem, size = 0x800, scoped, tag = 'scratch operand']
  %s0 = inlined_call_operand.hbm [shape: f32[2,32,32], index: 0, kind: input, shape index: {}]
  %s1 = inlined_call_operand.hbm [shape: f32[15,10], index: 1, kind: input, shape index: {}]
  %s2 = inlined_call_operand.vmem [shape: f32[8,36], index: 2, kind: input, shape index: {}]
  %s3 = inlined_call_operand.vmem [shape: f32[8,1], index: 3, kind: input, shape index: {}]
  %s4 = inlined_call_operand.hbm [shape: f32[2,8,8,8], index: 4, kind: output, shape index: {}]
  %s5 = sld [smem:[#allocation0]]
  $region57: #{tpu_custom_call.1} parent=0
    _
  %s7 = ssub.s32 1, %s5
  %s8 = scalar_select 0, %s7, %s5
  $region1: #{tpu_custom_call.1} parent=0
    #allocation3 [shape = 'u8[32768]{0}', space=vmem, size = 0x8000, scoped, tag = 'input window, operand 0']
    #allocation4 [shape = 's32[2]{0}', space=sflag, size = 0x8, scoped, tag = 'scoped memory for tpu_custom_call.1']
    #allocation5 [shape = 's32[2]{0}', space=sflag, size = 0x8, scoped, tag = 'scoped memory for tpu_custom_call.1']
    #allocation6 [shape = 'u8[8192]{0}', space=vmem, size = 0x2000, scoped, tag = 'input window, operand 1, single buffered']
    #allocation7 [shape = 's32[1]{0}', space=sflag, size = 0x4, scoped, tag = 'scoped memory for tpu_custom_call.1']
    #allocation8 [shape = 'u8[65536]{0}', space=vmem, size = 0x10000, scoped, tag = 'output window, operand 0']
    %9 = vsyncpa [#allocation4], 0
    %s10 = scalar_lea.sflag [#allocation4], 1
    %11 = vsyncpa %s10, 0
    %12 = vsyncpa [#allocation7], 0
    %13 = vsyncpa [#allocation5], 0
    %s14 = scalar_lea.sflag [#allocation5], 1
    %15 = vsyncpa %s14, 0
    loop: start=0, step=1, limit=4
    $region2: #{tpu_custom_call.1} parent=1 // loop_pre_header
      _
    $region3: #{tpu_custom_call.1} parent=1 // loop_header
      %s17 = sphi 0, %s21
      %p18 = scmp.ge.s32.totalorder %s17, 4
      %s27 = sphi 0, %s29
      %s30 = sphi 0, %s27
      %s31 = sphi 0, %s30
      %s47 = sphi 0, %s31
      %s51 = sphi 0, %s51
      %s53 = sphi 0, %s51
      %s54 = sphi 0, %s53
      %s68 = sphi 0, %s54
      %s72 = sphi 0, %s72
      %s74 = sphi 0, %s72
      %s75 = sphi 0, %s74
      %s89 = sphi 0, %s75
      %s93 = sphi 0, %s93
      %s95 = sphi 0, %s93
      %s96 = sphi 0, %s95
      %s110 = sphi 0, %s96
      %s116 = sphi 0, %s118
      %s119 = sphi 0, %s116
      %s120 = sphi 0, %s119
      %s136 = sphi 0, %s120
    $region4: #{tpu_custom_call.1} parent=1 // loop_header_branch
      %20 = sbr.rel (%p18) target = $region8
    $region5: #{tpu_custom_call.1} parent=1 // loop_body
      %s22 = ssub.s32 %s17, 1
      %s23 = ssub.s32 %s17, 2
      %s24 = sadd.s32 %s17, 1
      %s25 = ssub.s32 %s17, %s24
      %p26 = scmp.eq.s32.totalorder %s25, 0
      %s28 = sadd.s32 %s27, 1
      %s29 = scalar_select %p26, %s27, %s28
      %p32 = pneg %p26
      %p33 = scmp.eq.s32.totalorder %s17, 1
      %p34 = por %p32, %p33
      %p35 = scmp.ne.s32.totalorder %s27, %s30
      %p36 = scmp.eq.s32.totalorder %s17, 0
      %p37 = por %p35, %p36
      %p38 = scmp.ne.s32.totalorder %s27, %s30
      %p39 = scmp.eq.s32.totalorder %s22, 1
      %p40 = por %p38, %p39
      %p41 = scmp.ne.s32.totalorder %s30, %s31
      %p42 = scmp.eq.s32.totalorder %s22, 0
      %p43 = por %p41, %p42
      %p44 = scmp.ne.s32.totalorder %s30, %s31
      %p45 = scmp.eq.s32.totalorder %s23, 1
      %p46 = por %p44, %p45
      %p48 = scmp.ne.s32.totalorder %s31, %s47
      %p49 = scmp.eq.s32.totalorder %s23, 0
      %p50 = por %p48, %p49
      %s52 = sadd.s32 %s51, 1
      %p55 = scmp.eq.s32.totalorder %s17, 1
      %p56 = scmp.ne.s32.totalorder %s51, %s53
      %p57 = scmp.eq.s32.totalorder %s17, 0
      %p58 = por %p56, %p57
      %p59 = scmp.ne.s32.totalorder %s51, %s53
      %p60 = scmp.eq.s32.totalorder %s22, 1
      %p61 = por %p59, %p60
      %p62 = scmp.ne.s32.totalorder %s53, %s54
      %p63 = scmp.eq.s32.totalorder %s22, 0
      %p64 = por %p62, %p63
      %p65 = scmp.ne.s32.totalorder %s53, %s54
      %p66 = scmp.eq.s32.totalorder %s23, 1
      %p67 = por %p65, %p66
      %p69 = scmp.ne.s32.totalorder %s54, %s68
      %p70 = scmp.eq.s32.totalorder %s23, 0
      %p71 = por %p69, %p70
      %s73 = sadd.s32 %s72, 1
      %p76 = scmp.eq.s32.totalorder %s17, 1
      %p77 = scmp.ne.s32.totalorder %s72, %s74
      %p78 = scmp.eq.s32.totalorder %s17, 0
      %p79 = por %p77, %p78
      %p80 = scmp.ne.s32.totalorder %s72, %s74
      %p81 = scmp.eq.s32.totalorder %s22, 1
      %p82 = por %p80, %p81
      %p83 = scmp.ne.s32.totalorder %s74, %s75
      %p84 = scmp.eq.s32.totalorder %s22, 0
      %p85 = por %p83, %p84
      %p86 = scmp.ne.s32.totalorder %s74, %s75
      %p87 = scmp.eq.s32.totalorder %s23, 1
      %p88 = por %p86, %p87
      %p90 = scmp.ne.s32.totalorder %s75, %s89
      %p91 = scmp.eq.s32.totalorder %s23, 0
      %p92 = por %p90, %p91
      %s94 = sadd.s32 %s93, 1
      %p97 = scmp.eq.s32.totalorder %s17, 1
      %p98 = scmp.ne.s32.totalorder %s93, %s95
      %p99 = scmp.eq.s32.totalorder %s17, 0
      %p100 = por %p98, %p99
      %p101 = scmp.ne.s32.totalorder %s93, %s95
      %p102 = scmp.eq.s32.totalorder %s22, 1
      %p103 = por %p101, %p102
      %p104 = scmp.ne.s32.totalorder %s95, %s96
      %p105 = scmp.eq.s32.totalorder %s22, 0
      %p106 = por %p104, %p105
      %p107 = scmp.ne.s32.totalorder %s95, %s96
      %p108 = scmp.eq.s32.totalorder %s23, 1
      %p109 = por %p107, %p108
      %p111 = scmp.ne.s32.totalorder %s96, %s110
      %p112 = scmp.eq.s32.totalorder %s23, 0
      %p113 = por %p111, %p112
      %s114 = ssub.s32 %s17, %s24
      %p115 = scmp.eq.s32.totalorder %s114, 0
      %s117 = sadd.s32 %s116, 1
      %s118 = scalar_select %p115, %s116, %s117
      %p121 = pneg %p115
      %p122 = scmp.eq.s32.totalorder %s17, 1
      %p123 = por %p121, %p122
      %p124 = scmp.ne.s32.totalorder %s116, %s119
      %p125 = scmp.eq.s32.totalorder %s17, 0
      %p126 = por %p124, %p125
      %p127 = scmp.ne.s32.totalorder %s116, %s119
      %p128 = scmp.eq.s32.totalorder %s22, 1
      %p129 = por %p127, %p128
      %p130 = scmp.ne.s32.totalorder %s119, %s120
      %p131 = scmp.eq.s32.totalorder %s22, 0
      %p132 = por %p130, %p131
      %p133 = scmp.ne.s32.totalorder %s119, %s120
      %p134 = scmp.eq.s32.totalorder %s23, 1
      %p135 = por %p133, %p134
      %p137 = scmp.ne.s32.totalorder %s120, %s136
      %p138 = scmp.eq.s32.totalorder %s23, 0
      %p139 = por %p137, %p138
      %p140 = scmp.le.s32.totalorder 1, %s17
      %p141 = scmp.lt.s32.totalorder %s17, 3
      %p142 = pnand %p140, %p141
      %p143 = pneg %p142
      // Predicated region
      $region9: #{tpu_custom_call.1} parent=5 // pred_check
        _
      $region10: #{tpu_custom_call.1} parent=5 // pred_check_branch
        %145 = sbr.rel (%p142) target = $region12
      $region11: #{tpu_custom_call.1} parent=5 // pred_region
        %s146 = ssub.s32 %s17, 1
        // Predicated region
        $region13: #{tpu_custom_call.1} parent=11 // pred_check
          %p147 = pneg %p64
        $region14: #{tpu_custom_call.1} parent=11 // pred_check_branch
          %149 = sbr.rel (%p147) target = $region16
        $region15: #{tpu_custom_call.1} parent=11 // pred_region
          %151 = vsyncadd [#allocation7], 0
          %s152 = sshll.u32 %s1, 4
          %s153 = int_to_ptr.hbm [resolvable:$true] %s152
          %s154 = sshll.u32 [#allocation6], 4
          %s155 = int_to_ptr.vmem [resolvable:$true] %s154
          %160 = dma.hbm_to_vmem [thread:$0]  %s153, 256, %s155, [#allocation7], 128, 128, 8
        $region16: #{tpu_custom_call.1} parent=11 // pred_fallthru
          _
        // Predicated region
        $region17: #{tpu_custom_call.1} parent=11 // pred_check
          %p161 = pneg %p85
        $region18: #{tpu_custom_call.1} parent=11 // pred_check_branch
          %163 = sbr.rel (%p161) target = $region20
        $region19: #{tpu_custom_call.1} parent=11 // pred_region
          _
        $region20: #{tpu_custom_call.1} parent=11 // pred_fallthru
          _
        // Predicated region
        $region21: #{tpu_custom_call.1} parent=11 // pred_check
          %p164 = pneg %p106
        $region22: #{tpu_custom_call.1} parent=11 // pred_check_branch
          %166 = sbr.rel (%p164) target = $region24
        $region23: #{tpu_custom_call.1} parent=11 // pred_region
          _
        $region24: #{tpu_custom_call.1} parent=11 // pred_fallthru
          _
      $region12: #{tpu_custom_call.1} parent=5 // pred_fallthru
        _
      %p167 = scmp.lt.s32.totalorder %s17, 2
      // Predicated region
      $region25: #{tpu_custom_call.1} parent=5 // pred_check
        %p168 = pneg %p167
      $region26: #{tpu_custom_call.1} parent=5 // pred_check_branch
        %170 = sbr.rel (%p168) target = $region28
      $region27: #{tpu_custom_call.1} parent=5 // pred_region
        // Predicated region
        $region29: #{tpu_custom_call.1} parent=27 // pred_check
          %p171 = pneg %p37
        $region30: #{tpu_custom_call.1} parent=27 // pred_check_branch
          %173 = sbr.rel (%p171) target = $region32
        $region31: #{tpu_custom_call.1} parent=27 // pred_region
          %s174 = sand.u32 %s27, 1
          %s175 = scalar_lea.sflag [#allocation4], %s174
          %s176 = sand.u32 %s27, 1
          %s177 = smul.addr %s176, 32
          %s178 = scalar_lea.vmem [#allocation3], %s177
          %180 = vsyncadd %s175, 0
          %s181 = smul.addr %s17, 4
          %s182 = smul.addr %s181, 8
          %s183 = scalar_lea.hbm %s0, %s182
          %s184 = sshll.u32 %s183, 4
          %s185 = int_to_ptr.hbm [resolvable:$true] %s184
          %s186 = sshll.u32 %s178, 4
          %s187 = int_to_ptr.vmem [resolvable:$true] %s186
          %192 = dma.hbm_to_vmem [thread:$0]  %s185, 512, %s187, %s175, 128, 128, 8
        $region32: #{tpu_custom_call.1} parent=27 // pred_fallthru
          _
      $region28: #{tpu_custom_call.1} parent=5 // pred_fallthru
        _
      %p193 = scmp.le.s32.totalorder 1, %s17
      %p194 = scmp.lt.s32.totalorder %s17, 3
      %p195 = pnand %p193, %p194
      %p196 = pneg %p195
      // Predicated region
      $region33: #{tpu_custom_call.1} parent=5 // pred_check
        _
      $region34: #{tpu_custom_call.1} parent=5 // pred_check_branch
        %198 = sbr.rel (%p195) target = $region36
      $region35: #{tpu_custom_call.1} parent=5 // pred_region
        %s199 = ssub.s32 %s17, 1
        %s200 = sand.u32 %s30, 1
        %s201 = scalar_lea.sflag [#allocation4], %s200
        %s202 = sand.u32 %s30, 1
        %s203 = smul.addr %s202, 32
        %s204 = scalar_lea.vmem [#allocation3], %s203
        // Predicated region
        $region37: #{tpu_custom_call.1} parent=35 // pred_check
          %p205 = pneg %p43
        $region38: #{tpu_custom_call.1} parent=35 // pred_check_branch
          %207 = sbr.rel (%p205) target = $region40
        $region39: #{tpu_custom_call.1} parent=35 // pred_region
          %209 = dma.done %s201, 512
        $region40: #{tpu_custom_call.1} parent=35 // pred_fallthru
          _
        // Predicated region
        $region41: #{tpu_custom_call.1} parent=35 // pred_check
          %p210 = pneg %p64
        $region42: #{tpu_custom_call.1} parent=35 // pred_check_branch
          %212 = sbr.rel (%p210) target = $region44
        $region43: #{tpu_custom_call.1} parent=35 // pred_region
          %214 = dma.done [#allocation7], 256
        $region44: #{tpu_custom_call.1} parent=35 // pred_fallthru
          _
        %s215 = sand.u32 %s30, 1
        %s216 = scalar_lea.sflag [#allocation4], %s215
        %s217 = sand.u32 %s30, 1
        %s218 = smul.addr %s217, 32
        %s219 = scalar_lea.vmem [#allocation3], %s218
        %p220 = pneg %p43
        %p221 = pneg %p40
        %p222 = pneg %p64
        %p223 = pneg %p61
        %p224 = pneg %p85
        %p225 = pneg %p82
        %p226 = pneg %p106
        %p227 = pneg %p103
        %p228 = pneg %p132
        %p229 = pneg %p129
        %s230 = sand.u32 %s119, 1
        %s231 = scalar_lea.sflag [#allocation5], %s230
        %s232 = sand.u32 %s119, 1
        %s233 = smul.addr %s232, 64
        %s234 = scalar_lea.vmem [#allocation8], %s233
        %v235 = vld [vmem:[%s204] sm:$0xff]
        %v236 = vld [vmem:[%s204 + $0x8] sm:$0xff]
        %v237 = vld [vmem:[%s204 + $0x10] sm:$0xff]
        %v238 = vld [vmem:[%s204 + $0x18] sm:$0xff]
        %243 = vrot.lane.b32.xlu0 %v235, 112
        %v244 = vpop.permute.xlu0 %243
        %245 = vrot.lane.b32.xlu0 %v236, 112
        %v246 = vpop.permute.xlu0 %245
        %247 = vrot.lane.b32.xlu0 %v237, 112
        %v248 = vpop.permute.xlu0 %247
        %249 = vrot.lane.b32.xlu0 %v238, 112
        %v250 = vpop.permute.xlu0 %249
        %v255 = vmax.f32 %v235, %v244
        %v256 = vmax.f32 %v236, %v246
        %v257 = vmax.f32 %v237, %v248
        %v258 = vmax.f32 %v238, %v250
        %263 = vrot.lane.b32.xlu0 %v255, 127
        %v264 = vpop.permute.xlu0 %263
        %265 = vrot.lane.b32.xlu0 %v256, 127
        %v266 = vpop.permute.xlu0 %265
        %267 = vrot.lane.b32.xlu0 %v257, 127
        %v268 = vpop.permute.xlu0 %267
        %269 = vrot.lane.b32.xlu0 %v258, 127
        %v270 = vpop.permute.xlu0 %269
        %v275 = vmax.f32 %v255, %v264
        %v276 = vmax.f32 %v256, %v266
        %v277 = vmax.f32 %v257, %v268
        %v278 = vmax.f32 %v258, %v270
        %v279 = vld [vmem:[#allocation6] sm:$0xff]
        %v280 = vld [vmem:[#allocation6 + $0x8] sm:$0x7f]
        %vm281 = vcmask 121856
        %v283 = vsel %vm281, %v275, 0
        %v286 = vsel %vm281, %v276, 0
        %v289 = vsel %vm281, %v277, 0
        %v292 = vsel %vm281, %v278, 0
        %vm294 = vcmask 1046528
        %v296 = vsel %vm294, %v280, 0
        %298 = vmatpush.msra.mxu0 0.0
        %299 = vmatpush.msra.mxu0 0.0
        %300 = vmatpush.msra.mxu0 0.0
        %301 = vmatpush.msra.mxu0 0.0
        %302 = vmatpush.msra.mxu0 0.0
        %303 = vmatpush.msra.mxu0 0.0
        %304 = vmatpush.msra.mxu0 0.0
        %305 = vmatpush.msra.mxu0 0.0
        %306 = vmatpush.msra.mxu0 0.0
        %307 = vmatpush.msra.mxu0 0.0
        %308 = vmatpush.msra.mxu0 0.0
        %309 = vmatpush.msra.mxu0 0.0
        %310 = vmatpush.msra.mxu0 0.0
        %311 = vmatpush.msra.mxu0 0.0
        %312 = vmatpush.msra.mxu0 %v296
        %313 = vmatpush.msra.mxu0 %v279
        %314 = vmatmul.f32.gmra.mxu0 %v283
        %v315 = vpop.f32.mrf.mxu0
        %v316 = vadd.f32 0.0, %v315
        %317 = vmatmul.f32.gmra.mxu0 %v286
        %v318 = vpop.f32.mrf.mxu0
        %v319 = vadd.f32 0.0, %v318
        %320 = vmatmul.f32.gmra.mxu0 %v289
        %v321 = vpop.f32.mrf.mxu0
        %v322 = vadd.f32 0.0, %v321
        %323 = vmatmul.f32.gmra.mxu0 %v292
        %v324 = vpop.f32.mrf.mxu0
        %v325 = vadd.f32 0.0, %v324
        %326 = vdwg.mxu0
        %vm327 = vcmask 76800
        %328 = vst.msk [vmem:[#allocation2] sm:$0xf] %vm327, 0.0
        %vm329 = vcmask 831184
        %330 = vst.msk [vmem:[#allocation2] sm:$0xf] %vm329, 0.0
        %v335 = vrot.slane %v319, 7
        %vm336 = vcmask 1041409
        %v337 = vsel %vm336, %v335, %v316
        %v338 = vrot.slane %v322, 6
        %vm339 = vcmask 1042434
        %v340 = vsel %vm339, %v338, %v337
        %v341 = vrot.slane %v325, 5
        %vm342 = vcmask 1043459
        %v343 = vsel %vm342, %v341, %v340
        %344 = vrot.lane.b32.xlu0 %v343, 10
        %v345 = vpop.permute.xlu0 %344
        %vm347 = vcmask 158800
        %348 = vst.msk [vmem:[#allocation2] sm:$0xf] %vm347, %v345
        %v349 = vsel %vm339, %v335, %v316
        %v350 = vsel %vm342, %v338, %v349
        %vm351 = vcmask 1044484
        %v352 = vsel %vm351, %v341, %v350
        %353 = vrot.lane.b32.xlu0 %v352, 20
        %v354 = vpop.permute.xlu0 %353
        %vm356 = vcmask 241825
        %357 = vst.msk [vmem:[#allocation2 - $0x1] sm:$0x1e] %vm356, %v354
        %v358 = vsel %vm342, %v335, %v316
        %v359 = vsel %vm351, %v338, %v358
        %vm360 = vcmask 1045509
        %v361 = vsel %vm360, %v341, %v359
        %362 = vrot.lane.b32.xlu0 %v361, 30
        %v363 = vpop.permute.xlu0 %362
        %vm365 = vcmask 324850
        %366 = vst.msk [vmem:[#allocation2 - $0x2] sm:$0x3c] %vm365, %v363
        %v367 = vsel %vm351, %v335, %v316
        %v368 = vsel %vm360, %v338, %v367
        %vm369 = vcmask 1046534
        %v370 = vsel %vm369, %v341, %v368
        %371 = vrot.lane.b32.xlu0 %v370, 40
        %v372 = vpop.permute.xlu0 %371
        %vm374 = vcmask 407875
        %375 = vst.msk [vmem:[#allocation2 - $0x3] sm:$0x78] %vm374, %v372
        %v376 = vsel %vm360, %v335, %v316
        %v377 = vsel %vm369, %v338, %v376
        %vm378 = vcmask 1047559
        %v379 = vsel %vm378, %v341, %v377
        %380 = vrot.lane.b32.xlu0 %v379, 50
        %v381 = vpop.permute.xlu0 %380
        %vm383 = vcmask 490900
        %384 = vst.msk [vmem:[#allocation2 - $0x4] sm:$0xf0] %vm383, %v381
        %v385 = vsel %vm369, %v335, %v316
        %v386 = vsel %vm378, %v338, %v385
        %387 = vrot.lane.b32.xlu0 %v386, 60
        %v388 = vpop.permute.xlu0 %387
        %389 = vrot.lane.b32.xlu0 %v341, 60
        %v390 = vpop.permute.xlu0 %389
        %vm393 = vcmask 572901
        %394 = vst.msk [vmem:[#allocation2 - $0x5] sm:$0xe0] %vm393, %v388
        %vm395 = vcmask 565728
        %396 = vst.msk [vmem:[#allocation2 + $0x3] sm:$0x1] %vm395, %v390
        %v397 = vsel %vm378, %v335, %v316
        %v398 = vsel %vm336, %v341, %v338
        %399 = vrot.lane.b32.xlu0 %v397, 70
        %v400 = vpop.permute.xlu0 %399
        %401 = vrot.lane.b32.xlu0 %v398, 70
        %v402 = vpop.permute.xlu0 %401
        %vm405 = vcmask 654902
        %406 = vst.msk [vmem:[#allocation2 - $0x6] sm:$0xc0] %vm405, %v400
        %vm407 = vcmask 648752
        %408 = vst.msk [vmem:[#allocation2 + $0x2] sm:$0x3] %vm407, %v402
        %v409 = vsel %vm336, %v338, %v335
        %v410 = vsel %vm339, %v341, %v409
        %411 = vrot.lane.b32.xlu0 %v316, 80
        %v412 = vpop.permute.xlu0 %411
        %413 = vrot.lane.b32.xlu0 %v410, 80
        %v414 = vpop.permute.xlu0 %413
        %vm417 = vcmask 736903
        %418 = vst.msk [vmem:[#allocation2 - $0x7] sm:$0x80] %vm417, %v412
        %vm419 = vcmask 731776
        %420 = vst.msk [vmem:[#allocation2 + $0x1] sm:$0x7] %vm419, %v414
        %v421 = vld [vmem:[#allocation2] sm:$0xf]
        %v423 = vrot.slane %v421, 4
        %424 = vrot.lane.b32.xlu0 %v423, 127
        %v425 = vpop.permute.xlu0 %424
        %427 = vrot.lane.b32.xlu0 %v421, 126
        %v428 = vpop.permute.xlu0 %427
        %430 = vrot.lane.b32.xlu0 %v423, 118
        %v431 = vpop.permute.xlu0 %430
        %433 = vrot.lane.b32.xlu0 %v421, 117
        %v434 = vpop.permute.xlu0 %433
        %436 = vrot.lane.b32.xlu0 %v423, 116
        %v437 = vpop.permute.xlu0 %436
        %439 = vrot.lane.b32.xlu0 %v421, 108
        %v440 = vpop.permute.xlu0 %439
        %442 = vrot.lane.b32.xlu0 %v423, 107
        %v443 = vpop.permute.xlu0 %442
        %445 = vrot.lane.b32.xlu0 %v421, 106
        %v446 = vpop.permute.xlu0 %445
        %vm447 = vcmask 1043456
        %v448 = vsel %vm447, %v421, %v425
        %v449 = vsel %vm447, %v428, %v431
        %v450 = vsel %vm447, %v434, %v437
        %v451 = vsel %vm447, %v440, %v443
        %v452 = vld [vmem:[%s2] sm:$0xff]
        %v453 = vld [vmem:[%s3] sm:$0xff]
        %455 = vset.pattern.permute.xlu0 0
        %456 = vperm.xlu0 %455, %v453
        %v457 = vpop.permute.xlu0 %456
        %vm459 = vcmask 293888
        %v461 = vsel %vm459, %v452, 0
        %v463 = vsel %vm447, %v446, 0
        %465 = vmatpush.msra.mxu0 0.0
        %466 = vmatpush.msra.mxu0 0.0
        %467 = vmatpush.msra.mxu0 0.0
        %468 = vmatpush.msra.mxu0 0.0
        %469 = vmatpush.msra.mxu0 0.0
        %470 = vmatpush.msra.mxu0 0.0
        %471 = vmatpush.msra.mxu0 0.0
        %472 = vmatpush.msra.mxu0 0.0
        %473 = vmatpush.msra.mxu0 0.0
        %474 = vmatpush.msra.mxu0 0.0
        %475 = vmatpush.msra.mxu0 0.0
        %476 = vmatpush.msra.mxu0 %v463
        %477 = vmatpush.msra.mxu0 %v451
        %478 = vmatpush.msra.mxu0 %v450
        %479 = vmatpush.msra.mxu0 %v449
        %480 = vmatpush.msra.mxu0 %v448
        %481 = vmatmul.f32.gmra.mxu0 %v461
        %v482 = vpop.f32.mrf.mxu0
        %v483 = vadd.f32 %v457, %v482
        %484 = vdwg.mxu0
        %v485 = vmax.f32 %v483, 0.0
        %v487 = vrot.slane %v485, 1
        %v488 = vrot.slane %v485, 2
        %v489 = vrot.slane %v485, 3
        %v490 = vrot.slane %v485, 4
        %v491 = vrot.slane %v485, 5
        %v492 = vrot.slane %v485, 6
        %v493 = vrot.slane %v485, 7
        %vm501 = vcmask 57344
        %502 = vst.msk [vmem:[%s234] sm:$0x1] %vm501, %v485
        %503 = vst.msk [vmem:[%s234 + $0x8] sm:$0x1] %vm501, %v487
        %504 = vst.msk [vmem:[%s234 + $0x10] sm:$0x1] %vm501, %v488
        %505 = vst.msk [vmem:[%s234 + $0x18] sm:$0x1] %vm501, %v489
        %506 = vst.msk [vmem:[%s234 + $0x20] sm:$0x1] %vm501, %v490
        %507 = vst.msk [vmem:[%s234 + $0x28] sm:$0x1] %vm501, %v491
        %508 = vst.msk [vmem:[%s234 + $0x30] sm:$0x1] %vm501, %v492
        %509 = vst.msk [vmem:[%s234 + $0x38] sm:$0x1] %vm501, %v493
        %v510 = vperm.slane %v485, 0
        %v511 = vperm.slane %v487, 0
        %v512 = vperm.slane %v488, 0
        %v513 = vperm.slane %v489, 0
        %v514 = vperm.slane %v490, 0
        %v515 = vperm.slane %v491, 0
        %v516 = vperm.slane %v492, 0
        %v517 = vperm.slane %v493, 0
        %518 = vrot.lane.b32.xlu0 %v510, 118
        %v519 = vpop.permute.xlu0 %518
        %520 = vrot.lane.b32.xlu0 %v511, 118
        %v521 = vpop.permute.xlu0 %520
        %522 = vrot.lane.b32.xlu0 %v512, 118
        %v523 = vpop.permute.xlu0 %522
        %524 = vrot.lane.b32.xlu0 %v513, 118
        %v525 = vpop.permute.xlu0 %524
        %526 = vrot.lane.b32.xlu0 %v514, 118
        %v527 = vpop.permute.xlu0 %526
        %528 = vrot.lane.b32.xlu0 %v515, 118
        %v529 = vpop.permute.xlu0 %528
        %530 = vrot.lane.b32.xlu0 %v516, 118
        %v531 = vpop.permute.xlu0 %530
        %532 = vrot.lane.b32.xlu0 %v517, 118
        %v533 = vpop.permute.xlu0 %532
        %542 = vst.msk [vmem:[%s234 + $0x1] sm:$0x1] %vm501, %v519
        %543 = vst.msk [vmem:[%s234 + $0x9] sm:$0x1] %vm501, %v521
        %544 = vst.msk [vmem:[%s234 + $0x11] sm:$0x1] %vm501, %v523
        %545 = vst.msk [vmem:[%s234 + $0x19] sm:$0x1] %vm501, %v525
        %546 = vst.msk [vmem:[%s234 + $0x21] sm:$0x1] %vm501, %v527
        %547 = vst.msk [vmem:[%s234 + $0x29] sm:$0x1] %vm501, %v529
        %548 = vst.msk [vmem:[%s234 + $0x31] sm:$0x1] %vm501, %v531
        %549 = vst.msk [vmem:[%s234 + $0x39] sm:$0x1] %vm501, %v533
        %550 = vrot.lane.b32.xlu0 %v510, 108
        %v551 = vpop.permute.xlu0 %550
        %552 = vrot.lane.b32.xlu0 %v511, 108
        %v553 = vpop.permute.xlu0 %552
        %554 = vrot.lane.b32.xlu0 %v512, 108
        %v555 = vpop.permute.xlu0 %554
        %556 = vrot.lane.b32.xlu0 %v513, 108
        %v557 = vpop.permute.xlu0 %556
        %558 = vrot.lane.b32.xlu0 %v514, 108
        %v559 = vpop.permute.xlu0 %558
        %560 = vrot.lane.b32.xlu0 %v515, 108
        %v561 = vpop.permute.xlu0 %560
        %562 = vrot.lane.b32.xlu0 %v516, 108
        %v563 = vpop.permute.xlu0 %562
        %564 = vrot.lane.b32.xlu0 %v517, 108
        %v565 = vpop.permute.xlu0 %564
        %574 = vst.msk [vmem:[%s234 + $0x2] sm:$0x1] %vm501, %v551
        %575 = vst.msk [vmem:[%s234 + $0xa] sm:$0x1] %vm501, %v553
        %576 = vst.msk [vmem:[%s234 + $0x12] sm:$0x1] %vm501, %v555
        %577 = vst.msk [vmem:[%s234 + $0x1a] sm:$0x1] %vm501, %v557
        %578 = vst.msk [vmem:[%s234 + $0x22] sm:$0x1] %vm501, %v559
        %579 = vst.msk [vmem:[%s234 + $0x2a] sm:$0x1] %vm501, %v561
        %580 = vst.msk [vmem:[%s234 + $0x32] sm:$0x1] %vm501, %v563
        %581 = vst.msk [vmem:[%s234 + $0x3a] sm:$0x1] %vm501, %v565
        %582 = vrot.lane.b32.xlu0 %v510, 98
        %v583 = vpop.permute.xlu0 %582
        %584 = vrot.lane.b32.xlu0 %v511, 98
        %v585 = vpop.permute.xlu0 %584
        %586 = vrot.lane.b32.xlu0 %v512, 98
        %v587 = vpop.permute.xlu0 %586
        %588 = vrot.lane.b32.xlu0 %v513, 98
        %v589 = vpop.permute.xlu0 %588
        %590 = vrot.lane.b32.xlu0 %v514, 98
        %v591 = vpop.permute.xlu0 %590
        %592 = vrot.lane.b32.xlu0 %v515, 98
        %v593 = vpop.permute.xlu0 %592
        %594 = vrot.lane.b32.xlu0 %v516, 98
        %v595 = vpop.permute.xlu0 %594
        %596 = vrot.lane.b32.xlu0 %v517, 98
        %v597 = vpop.permute.xlu0 %596
        %606 = vst.msk [vmem:[%s234 + $0x3] sm:$0x1] %vm501, %v583
        %607 = vst.msk [vmem:[%s234 + $0xb] sm:$0x1] %vm501, %v585
        %608 = vst.msk [vmem:[%s234 + $0x13] sm:$0x1] %vm501, %v587
        %609 = vst.msk [vmem:[%s234 + $0x1b] sm:$0x1] %vm501, %v589
        %610 = vst.msk [vmem:[%s234 + $0x23] sm:$0x1] %vm501, %v591
        %611 = vst.msk [vmem:[%s234 + $0x2b] sm:$0x1] %vm501, %v593
        %612 = vst.msk [vmem:[%s234 + $0x33] sm:$0x1] %vm501, %v595
        %613 = vst.msk [vmem:[%s234 + $0x3b] sm:$0x1] %vm501, %v597
        %614 = vrot.lane.b32.xlu0 %v510, 88
        %v615 = vpop.permute.xlu0 %614
        %616 = vrot.lane.b32.xlu0 %v511, 88
        %v617 = vpop.permute.xlu0 %616
        %618 = vrot.lane.b32.xlu0 %v512, 88
        %v619 = vpop.permute.xlu0 %618
        %620 = vrot.lane.b32.xlu0 %v513, 88
        %v621 = vpop.permute.xlu0 %620
        %622 = vrot.lane.b32.xlu0 %v514, 88
        %v623 = vpop.permute.xlu0 %622
        %624 = vrot.lane.b32.xlu0 %v515, 88
        %v625 = vpop.permute.xlu0 %624
        %626 = vrot.lane.b32.xlu0 %v516, 88
        %v627 = vpop.permute.xlu0 %626
        %628 = vrot.lane.b32.xlu0 %v517, 88
        %v629 = vpop.permute.xlu0 %628
        %638 = vst.msk [vmem:[%s234 + $0x4] sm:$0x1] %vm501, %v615
        %639 = vst.msk [vmem:[%s234 + $0xc] sm:$0x1] %vm501, %v617
        %640 = vst.msk [vmem:[%s234 + $0x14] sm:$0x1] %vm501, %v619
        %641 = vst.msk [vmem:[%s234 + $0x1c] sm:$0x1] %vm501, %v621
        %642 = vst.msk [vmem:[%s234 + $0x24] sm:$0x1] %vm501, %v623
        %643 = vst.msk [vmem:[%s234 + $0x2c] sm:$0x1] %vm501, %v625
        %644 = vst.msk [vmem:[%s234 + $0x34] sm:$0x1] %vm501, %v627
        %645 = vst.msk [vmem:[%s234 + $0x3c] sm:$0x1] %vm501, %v629
        %646 = vrot.lane.b32.xlu0 %v510, 78
        %v647 = vpop.permute.xlu0 %646
        %648 = vrot.lane.b32.xlu0 %v511, 78
        %v649 = vpop.permute.xlu0 %648
        %650 = vrot.lane.b32.xlu0 %v512, 78
        %v651 = vpop.permute.xlu0 %650
        %652 = vrot.lane.b32.xlu0 %v513, 78
        %v653 = vpop.permute.xlu0 %652
        %654 = vrot.lane.b32.xlu0 %v514, 78
        %v655 = vpop.permute.xlu0 %654
        %656 = vrot.lane.b32.xlu0 %v515, 78
        %v657 = vpop.permute.xlu0 %656
        %658 = vrot.lane.b32.xlu0 %v516, 78
        %v659 = vpop.permute.xlu0 %658
        %660 = vrot.lane.b32.xlu0 %v517, 78
        %v661 = vpop.permute.xlu0 %660
        %670 = vst.msk [vmem:[%s234 + $0x5] sm:$0x1] %vm501, %v647
        %671 = vst.msk [vmem:[%s234 + $0xd] sm:$0x1] %vm501, %v649
        %672 = vst.msk [vmem:[%s234 + $0x15] sm:$0x1] %vm501, %v651
        %673 = vst.msk [vmem:[%s234 + $0x1d] sm:$0x1] %vm501, %v653
        %674 = vst.msk [vmem:[%s234 + $0x25] sm:$0x1] %vm501, %v655
        %675 = vst.msk [vmem:[%s234 + $0x2d] sm:$0x1] %vm501, %v657
        %676 = vst.msk [vmem:[%s234 + $0x35] sm:$0x1] %vm501, %v659
        %677 = vst.msk [vmem:[%s234 + $0x3d] sm:$0x1] %vm501, %v661
        %678 = vrot.lane.b32.xlu0 %v510, 68
        %v679 = vpop.permute.xlu0 %678
        %680 = vrot.lane.b32.xlu0 %v511, 68
        %v681 = vpop.permute.xlu0 %680
        %682 = vrot.lane.b32.xlu0 %v512, 68
        %v683 = vpop.permute.xlu0 %682
        %684 = vrot.lane.b32.xlu0 %v513, 68
        %v685 = vpop.permute.xlu0 %684
        %686 = vrot.lane.b32.xlu0 %v514, 68
        %v687 = vpop.permute.xlu0 %686
        %688 = vrot.lane.b32.xlu0 %v515, 68
        %v689 = vpop.permute.xlu0 %688
        %690 = vrot.lane.b32.xlu0 %v516, 68
        %v691 = vpop.permute.xlu0 %690
        %692 = vrot.lane.b32.xlu0 %v517, 68
        %v693 = vpop.permute.xlu0 %692
        %702 = vst.msk [vmem:[%s234 + $0x6] sm:$0x1] %vm501, %v679
        %703 = vst.msk [vmem:[%s234 + $0xe] sm:$0x1] %vm501, %v681
        %704 = vst.msk [vmem:[%s234 + $0x16] sm:$0x1] %vm501, %v683
        %705 = vst.msk [vmem:[%s234 + $0x1e] sm:$0x1] %vm501, %v685
        %706 = vst.msk [vmem:[%s234 + $0x26] sm:$0x1] %vm501, %v687
        %707 = vst.msk [vmem:[%s234 + $0x2e] sm:$0x1] %vm501, %v689
        %708 = vst.msk [vmem:[%s234 + $0x36] sm:$0x1] %vm501, %v691
        %709 = vst.msk [vmem:[%s234 + $0x3e] sm:$0x1] %vm501, %v693
        %710 = vrot.lane.b32.xlu0 %v510, 58
        %v711 = vpop.permute.xlu0 %710
        %712 = vrot.lane.b32.xlu0 %v511, 58
        %v713 = vpop.permute.xlu0 %712
        %714 = vrot.lane.b32.xlu0 %v512, 58
        %v715 = vpop.permute.xlu0 %714
        %716 = vrot.lane.b32.xlu0 %v513, 58
        %v717 = vpop.permute.xlu0 %716
        %718 = vrot.lane.b32.xlu0 %v514, 58
        %v719 = vpop.permute.xlu0 %718
        %720 = vrot.lane.b32.xlu0 %v515, 58
        %v721 = vpop.permute.xlu0 %720
        %722 = vrot.lane.b32.xlu0 %v516, 58
        %v723 = vpop.permute.xlu0 %722
        %724 = vrot.lane.b32.xlu0 %v517, 58
        %v725 = vpop.permute.xlu0 %724
        %734 = vst.msk [vmem:[%s234 + $0x7] sm:$0x1] %vm501, %v711
        %735 = vst.msk [vmem:[%s234 + $0xf] sm:$0x1] %vm501, %v713
        %736 = vst.msk [vmem:[%s234 + $0x17] sm:$0x1] %vm501, %v715
        %737 = vst.msk [vmem:[%s234 + $0x1f] sm:$0x1] %vm501, %v717
        %738 = vst.msk [vmem:[%s234 + $0x27] sm:$0x1] %vm501, %v719
        %739 = vst.msk [vmem:[%s234 + $0x2f] sm:$0x1] %vm501, %v721
        %740 = vst.msk [vmem:[%s234 + $0x37] sm:$0x1] %vm501, %v723
        %741 = vst.msk [vmem:[%s234 + $0x3f] sm:$0x1] %vm501, %v725
        %s742 = sand.u32 %s119, 1
        %s743 = scalar_lea.sflag [#allocation5], %s742
        %s744 = sand.u32 %s119, 1
        %s745 = smul.addr %s744, 64
        %s746 = scalar_lea.vmem [#allocation8], %s745
        // Predicated region
        $region45: #{tpu_custom_call.1} parent=35 // pred_check
          %p747 = pneg %p129
        $region46: #{tpu_custom_call.1} parent=35 // pred_check_branch
          %749 = sbr.rel (%p747) target = $region48
        $region47: #{tpu_custom_call.1} parent=35 // pred_region
          %751 = vsyncadd %s743, 0
          %s752 = smul.addr %s22, 8
          %s753 = smul.addr %s752, 8
          %s754 = scalar_lea.hbm %s4, %s753
          %s755 = sshll.u32 %s746, 4
          %s756 = int_to_ptr.vmem [resolvable:$true] %s755
          %s757 = sshll.u32 %s754, 4
          %s758 = int_to_ptr.hbm [resolvable:$true] %s757
          %763 = dma.vmem_to_hbm [thread:$0]  %s756, 1024, %s758, %s743, 128, 128, 8
        $region48: #{tpu_custom_call.1} parent=35 // pred_fallthru
          _
      $region36: #{tpu_custom_call.1} parent=5 // pred_fallthru
        _
      %p764 = scmp.le.s32.totalorder 2, %s17
      // Predicated region
      $region49: #{tpu_custom_call.1} parent=5 // pred_check
        %p765 = pneg %p764
      $region50: #{tpu_custom_call.1} parent=5 // pred_check_branch
        %767 = sbr.rel (%p765) target = $region52
      $region51: #{tpu_custom_call.1} parent=5 // pred_region
        %s768 = ssub.s32 %s17, 2
        // Predicated region
        $region53: #{tpu_custom_call.1} parent=51 // pred_check
          %p769 = pneg %p135
        $region54: #{tpu_custom_call.1} parent=51 // pred_check_branch
          %771 = sbr.rel (%p769) target = $region56
        $region55: #{tpu_custom_call.1} parent=51 // pred_region
          %s772 = sand.u32 %s120, 1
          %s773 = scalar_lea.sflag [#allocation5], %s772
          %s774 = sand.u32 %s120, 1
          %s775 = smul.addr %s774, 64
          %s776 = scalar_lea.vmem [#allocation8], %s775
          %778 = dma.done %s773, 1024
        $region56: #{tpu_custom_call.1} parent=51 // pred_fallthru
          _
      $region52: #{tpu_custom_call.1} parent=5 // pred_fallthru
        _
    $region6: #{tpu_custom_call.1} parent=1 // loop_footer
      %s21 = sadd.s32 1, %s17
    $region7: #{tpu_custom_call.1} parent=1 // loop_footer_branch
      %16 = sbr.rel target = $region3
    $region8: #{tpu_custom_call.1} parent=1 // loop_exit
      _
    %779 = vsyncpa [#allocation4], 1
    %s780 = scalar_lea.sflag [#allocation4], 1
    %781 = vsyncpa %s780, 1
    %782 = vsyncpa [#allocation7], 1
    %783 = vsyncpa [#allocation5], 1
    %s784 = scalar_lea.sflag [#allocation5], 1
    %785 = vsyncpa %s784, 1

</llo_original>
